<compile_context>
chip_gen: v5e
topology: v5e:2x2
jax: 0.10.0
libtpu: 0.0.40
codegen_flags: <defaults>
</compile_context>

<pallas_src>
import jax
import jax.numpy as jnp
from jax.experimental import pallas as pl
from jax.experimental.pallas import tpu as pltpu

_MAX_LANE = 1024                  # lane-dense last dim, multiple of 128
_TILE_BYTES = 4 * 1024 * 1024     # ~4 MiB per-operand tile target
_MIN_GRID = 8                     # keep >= ~8 row-tiles so v7x's 2 TCs stay fed
_VMEM_LIMIT = 32 * 1024 * 1024    # 3 operands x 2 buffers x ~4 MiB = ~24 MiB live


def _round_up(x, m):
    return -(-x // m) * m


def _sublane(dtype):
    # Sub-32-bit dtypes pack along sublanes: (8,128) f32, (16,128) bf16, (32,128) 8-bit.
    return {4: 8, 2: 16, 1: 32}.get(jnp.dtype(dtype).itemsize, 8)


def _patch_apply_kernel(img_ref, patch_ref, out_ref):
    # out = clamp(patch * 0.7 + img, 0, 1), computed in f32 on the VPU.
    img = img_ref[...].astype(jnp.float32)
    patch = patch_ref[...].astype(jnp.float32)
    blended = patch * jnp.float32(0.7) + img
    out_ref[...] = jnp.clip(blended, 0.0, 1.0).astype(out_ref.dtype)


def patch_applier(img_batch, patch, patch_mask_tf, *, donate_padded_input=False):
    """JAX/Pallas equivalent of PatchApplier.forward.

    img_batch, patch: (N, C, H, W) float arrays (same shape).
    patch_mask_tf: accepted for signature parity; the PyTorch module computes
    patch_mask from it but never uses it in the returned value.
    """
    del patch_mask_tf  # dead code in the original forward (mask never applied)
    orig_shape = img_batch.shape
    dtype = img_batch.dtype
    itemsize = jnp.dtype(dtype).itemsize
    total = img_batch.size

    # --- lane: largest multiple-of-128 divisor of total (pad-free path) ---
    lane = 0
    cand = 128
    while cand <= min(_MAX_LANE, total):
        if total % cand == 0:
            lane = cand
        cand += 128

    if lane:
        padded_total = total                      # pure reshape, no pad/slice
    else:
        # No multiple-of-128 divisor: fall back to padding to one lane multiple.
        lane = _MAX_LANE if total >= _MAX_LANE else _round_up(total, 128)
        padded_total = _round_up(total, lane)
    rows = padded_total // lane

    # --- tile_rows: ~4 MiB tiles, dtype-aware sublane rounding, grid >= ~8 ---
    sub = _sublane(dtype)
    if rows <= sub:
        tile_rows = rows                          # single block == full array dim
    else:
        target = max(sub, _TILE_BYTES // (lane * itemsize))
        cap = max(sub, _round_up(pl.cdiv(rows, _MIN_GRID), sub))
        tile_rows = min(_round_up(target, sub), cap, _round_up(rows, sub))
    grid = pl.cdiv(rows, tile_rows)               # Pallas masks the ragged last block

    def to2d(x):
        flat = x.reshape(-1)
        if padded_total != total:
            flat = jnp.pad(flat, (0, padded_total - total))
        return flat.reshape(rows, lane)

    img2d = to2d(img_batch)
    patch2d = to2d(patch)

    aliases = {}
    if donate_padded_input and padded_total != total:
        # img2d is a fresh padded intermediate -> safe to reuse for the output.
        aliases = {0: 0}

    out2d = pl.pallas_call(
        _patch_apply_kernel,
        out_shape=jax.ShapeDtypeStruct((rows, lane), dtype),
        grid=(grid,),
        in_specs=[
            pl.BlockSpec((tile_rows, lane), lambda i: (i, 0)),
            pl.BlockSpec((tile_rows, lane), lambda i: (i, 0)),
        ],
        out_specs=pl.BlockSpec((tile_rows, lane), lambda i: (i, 0)),
        compiler_params=pltpu.CompilerParams(
            dimension_semantics=("parallel",),
            vmem_limit_bytes=_VMEM_LIMIT,
        ),
        cost_estimate=pl.CostEstimate(
            flops=3 * total,
            transcendentals=0,
            bytes_accessed=3 * total * itemsize,
        ),
        input_output_aliases=aliases,
    )(img2d, patch2d)

    out_flat = out2d.reshape(-1)
    if padded_total != total:
        out_flat = out_flat[:total]
    return out_flat.reshape(orig_shape)


if __name__ == "__main__":
    key = jax.random.PRNGKey(0)
    k_img, k_patch, k_mask = jax.random.split(key, 3)

    N, C, H, W = 2, 4, 16, 16
    img_batch = jax.random.uniform(k_img, (N, C, H, W), dtype=jnp.float32)
    patch = jax.random.uniform(k_patch, (N, C, H, W), dtype=jnp.float32)
    patch_mask_tf = (jax.random.uniform(k_mask, (N, C, H, W)) > 0.5).astype(
        jnp.float32
    )

    out = patch_applier(img_batch, patch, patch_mask_tf)
    out = jax.block_until_ready(out)

    # Reference check in plain JAX (matches the PyTorch forward's return value).
    ref = jnp.clip(patch * 0.7 + img_batch, 0.0, 1.0)
    assert out.shape == (N, C, H, W)
    assert jnp.allclose(out, ref, atol=1e-6), "mismatch vs reference"

    print("KERNEL_OK")
</pallas_src>

<mosaic_0001>
module attributes {stable_mosaic.version = 11 : i64} {
  func.func @_patch_apply_kernel(%arg0: i32, %arg1: memref<2x1024xf32, #tpu.memory_space<vmem>>, %arg2: memref<2x1024xf32, #tpu.memory_space<vmem>>, %arg3: memref<2x1024xf32, #tpu.memory_space<vmem>>) attributes {dimension_semantics = [#tpu.dimension_semantics<parallel>], iteration_bounds = array<i64: 1>, scalar_prefetch = 0 : i64, scratch_operands = 0 : i64, tpu.core_type = #tpu.core_type<tc>, window_params = [{transform_indices = @transform_0, window_bounds = array<i64: 2, 1024>}, {transform_indices = @transform_1, window_bounds = array<i64: 2, 1024>}, {transform_indices = @transform_2, window_bounds = array<i64: 2, 1024>}]} {
    %c0 = arith.constant 0 : index
    %c0_0 = arith.constant 0 : index
    %0 = vector.load %arg1[%c0, %c0_0] : memref<2x1024xf32, #tpu.memory_space<vmem>>, vector<2x1024xf32>
    %c0_1 = arith.constant 0 : index
    %c0_2 = arith.constant 0 : index
    %1 = vector.load %arg2[%c0_1, %c0_2] : memref<2x1024xf32, #tpu.memory_space<vmem>>, vector<2x1024xf32>
    %cst = arith.constant 0.699999988 : f32
    %2 = vector.broadcast %cst : f32 to vector<2x1024xf32>
    %3 = arith.mulf %1, %2 : vector<2x1024xf32>
    %4 = arith.addf %3, %0 : vector<2x1024xf32>
    %cst_3 = arith.constant 0.000000e+00 : f32
    %cst_4 = arith.constant 1.000000e+00 : f32
    %5 = vector.broadcast %cst_3 : f32 to vector<2x1024xf32>
    %6 = arith.maximumf %5, %4 : vector<2x1024xf32>
    %7 = vector.broadcast %cst_4 : f32 to vector<2x1024xf32>
    %8 = arith.minimumf %7, %6 : vector<2x1024xf32>
    %c0_5 = arith.constant 0 : index
    %c0_6 = arith.constant 0 : index
    %9 = vector.load %arg3[%c0_5, %c0_6] : memref<2x1024xf32, #tpu.memory_space<vmem>>, vector<2x1024xf32>
    tpu.vector_store %arg3[%c0_5, %c0_6], %8 {strides = array<i32>} : memref<2x1024xf32, #tpu.memory_space<vmem>>, vector<2x1024xf32>,
    return
  }
  func.func @transform_0(%arg0: i32) -> (i32, i32) {
    %c0_i32 = arith.constant 0 : i32
    %c0_i32_0 = arith.constant 0 : i32
    return %arg0, %c0_i32 : i32, i32
  }
  func.func @transform_1(%arg0: i32) -> (i32, i32) {
    %c0_i32 = arith.constant 0 : i32
    %c0_i32_0 = arith.constant 0 : i32
    return %arg0, %c0_i32 : i32, i32
  }
  func.func @transform_2(%arg0: i32) -> (i32, i32) {
    %c0_i32 = arith.constant 0 : i32
    %c0_i32_0 = arith.constant 0 : i32
    return %arg0, %c0_i32 : i32, i32
  }
}

</mosaic_0001>

<llo_original>
// kernel: tpu_custom_call.1
$region0: #{tpu_custom_call.1}
  #allocation0 [shape = 'u32[]', space=smem, size = 0x4, offset = 0x4, fixed_abs, tag = 'smem constant byte address 0x4 - core index']
  #allocation1 [shape = 'u32[72,128]{1,0:T(1,128)}', space=vmem, size = 0x9000, scoped, tag = 'internal scratch']
  %s0 = inlined_call_operand.hbm [shape: f32[2,1024], index: 0, kind: input, shape index: {}]
  %s1 = inlined_call_operand.hbm [shape: f32[2,1024], index: 1, kind: input, shape index: {}]
  %s2 = inlined_call_operand.hbm [shape: f32[2,1024], index: 2, kind: output, shape index: {}]
  %s3 = sld [smem:[#allocation0]]
  $region26: #{tpu_custom_call.1} parent=0
    _
  %s5 = ssub.s32 1, %s3
  %s6 = scalar_select 0, %s5, %s3
  $region1: #{tpu_custom_call.1} parent=0
    #allocation2 [shape = 'u8[8192]{0}', space=vmem, size = 0x2000, scoped, tag = 'input window, operand 0, single buffered']
    #allocation3 [shape = 's32[1]{0}', space=sflag, size = 0x4, scoped, tag = 'scoped memory for tpu_custom_call.1']
    #allocation4 [shape = 's32[1]{0}', space=sflag, size = 0x4, scoped, tag = 'scoped memory for tpu_custom_call.1']
    #allocation5 [shape = 'u8[8192]{0}', space=vmem, size = 0x2000, scoped, tag = 'input window, operand 1, single buffered']
    #allocation6 [shape = 's32[1]{0}', space=sflag, size = 0x4, scoped, tag = 'scoped memory for tpu_custom_call.1']
    #allocation7 [shape = 'u8[8192]{0}', space=vmem, size = 0x2000, scoped, tag = 'output window, operand 0, single buffered']
    %7 = vsyncpa [#allocation3], 0
    %8 = vsyncpa [#allocation6], 0
    %9 = vsyncpa [#allocation4], 0
    // Predicated region
    $region2: #{tpu_custom_call.1} parent=1 // pred_check
      _
    $region3: #{tpu_custom_call.1} parent=1 // pred_check_branch
      %11 = sbr.rel (0) target = $region5
    $region4: #{tpu_custom_call.1} parent=1 // pred_region
      %13 = vsyncadd [#allocation3], 0
      %s15 = sshll.u32 %s0, 4
      %s16 = int_to_ptr.hbm [resolvable:$true] %s15
      %s17 = sshll.u32 [#allocation2], 4
      %s18 = int_to_ptr.vmem [resolvable:$true] %s17
      %20 = dma.hbm_to_vmem [thread:$0]  %s16, 256, %s18, [#allocation3]
    $region5: #{tpu_custom_call.1} parent=1 // pred_fallthru
      _
    // Predicated region
    $region6: #{tpu_custom_call.1} parent=1 // pred_check
      _
    $region7: #{tpu_custom_call.1} parent=1 // pred_check_branch
      %22 = sbr.rel (0) target = $region9
    $region8: #{tpu_custom_call.1} parent=1 // pred_region
      %24 = vsyncadd [#allocation6], 0
      %s26 = sshll.u32 %s1, 4
      %s27 = int_to_ptr.hbm [resolvable:$true] %s26
      %s28 = sshll.u32 [#allocation5], 4
      %s29 = int_to_ptr.vmem [resolvable:$true] %s28
      %31 = dma.hbm_to_vmem [thread:$0]  %s27, 256, %s29, [#allocation6]
    $region9: #{tpu_custom_call.1} parent=1 // pred_fallthru
      _
    // Predicated region
    $region10: #{tpu_custom_call.1} parent=1 // pred_check
      _
    $region11: #{tpu_custom_call.1} parent=1 // pred_check_branch
      %33 = sbr.rel (0) target = $region13
    $region12: #{tpu_custom_call.1} parent=1 // pred_region
      %35 = dma.done [#allocation3], 256
    $region13: #{tpu_custom_call.1} parent=1 // pred_fallthru
      _
    // Predicated region
    $region14: #{tpu_custom_call.1} parent=1 // pred_check
      _
    $region15: #{tpu_custom_call.1} parent=1 // pred_check_branch
      %37 = sbr.rel (0) target = $region17
    $region16: #{tpu_custom_call.1} parent=1 // pred_region
      %39 = dma.done [#allocation6], 256
    $region17: #{tpu_custom_call.1} parent=1 // pred_fallthru
      _
    %v40 = vld [vmem:[#allocation2] sm:$0xff]
    %v41 = vld [vmem:[#allocation2 + $0x8] sm:$0xff]
    %v42 = vld [vmem:[#allocation5] sm:$0xff]
    %v43 = vld [vmem:[#allocation5 + $0x8] sm:$0xff]
    %v44 = vmul.f32 %v42, 0.7
    %v45 = vmul.f32 %v43, 0.7
    %v46 = vadd.f32 %v44, %v40
    %v47 = vadd.f32 %v45, %v41
    %v48 = vmax.f32 %v46, 0.0
    %v49 = vmax.f32 %v47, 0.0
    %v50 = vmin.f32 %v48, 1.0
    %v51 = vmin.f32 %v49, 1.0
    %52 = vst [vmem:[#allocation7] sm:$0xff] %v50
    %53 = vst [vmem:[#allocation7 + $0x8] sm:$0xff] %v51
    // Predicated region
    $region18: #{tpu_custom_call.1} parent=1 // pred_check
      _
    $region19: #{tpu_custom_call.1} parent=1 // pred_check_branch
      %55 = sbr.rel (0) target = $region21
    $region20: #{tpu_custom_call.1} parent=1 // pred_region
      %57 = vsyncadd [#allocation4], 0
      %s59 = sshll.u32 [#allocation7], 4
      %s60 = int_to_ptr.vmem [resolvable:$true] %s59
      %s61 = sshll.u32 %s2, 4
      %s62 = int_to_ptr.hbm [resolvable:$true] %s61
      %64 = dma.vmem_to_hbm [thread:$0]  %s60, 256, %s62, [#allocation4]
    $region21: #{tpu_custom_call.1} parent=1 // pred_fallthru
      _
    // Predicated region
    $region22: #{tpu_custom_call.1} parent=1 // pred_check
      _
    $region23: #{tpu_custom_call.1} parent=1 // pred_check_branch
      %66 = sbr.rel (0) target = $region25
    $region24: #{tpu_custom_call.1} parent=1 // pred_region
      %68 = dma.done [#allocation4], 256
    $region25: #{tpu_custom_call.1} parent=1 // pred_fallthru
      _
    %69 = vsyncpa [#allocation3], 1
    %70 = vsyncpa [#allocation6], 1
    %71 = vsyncpa [#allocation4], 1

</llo_original>
